<compile_context>
chip_gen: v7x
topology: tpu7x:2x2x1
jax: 0.10.0
libtpu: 0.0.40
codegen_flags: <defaults>
</compile_context>

<pallas_src>
import functools

import jax
import jax.numpy as jnp
from jax import lax
from jax.experimental import pallas as pl
from jax.experimental.pallas import tpu as pltpu


def _round_up(v, m):
    return ((v + m - 1) // m) * m


def _cdiv(a, b):
    return (a + b - 1) // b


# -----------------------------------------------------------------------------
# Kernels
# -----------------------------------------------------------------------------
def _linear_kernel_single(x_ref, w_ref, b_ref, o_ref):
    """Single-D-block path.  x:(tb, D)  w:(tk, D)  b:(1, tk)  o:(tb, tk).

    Contracts dim 1 of both operands (== x @ W^T), so the torch-layout weight
    is consumed as-is: no HBM-side transpose, no accumulator scratch.
    """
    acc = lax.dot_general(
        x_ref[...], w_ref[...],
        dimension_numbers=(((1,), (1,)), ((), ())),
        preferred_element_type=jnp.float32,
    )
    o_ref[...] = (acc + b_ref[...]).astype(o_ref.dtype)


def _linear_kernel_reduce(x_ref, w_ref, b_ref, o_ref, acc_ref, *, d_total, td):
    """Large-D path.  grid = (B tiles, K tiles, D tiles); D is the reduction."""
    k = pl.program_id(2)

    @pl.when(k == 0)
    def _init():
        acc_ref[...] = jnp.zeros_like(acc_ref)

    x = x_ref[...]
    w = w_ref[...]
    if d_total % td != 0:
        # Ragged last D block: zero the out-of-range tail of BOTH operands so
        # stale-VMEM garbage (possibly NaN) cannot corrupt the contraction.
        d_base = k * td
        cx = lax.broadcasted_iota(jnp.int32, x.shape, 1) + d_base
        cw = lax.broadcasted_iota(jnp.int32, w.shape, 1) + d_base
        x = jnp.where(cx < d_total, x, jnp.zeros_like(x))
        w = jnp.where(cw < d_total, w, jnp.zeros_like(w))

    acc_ref[...] += lax.dot_general(
        x, w,
        dimension_numbers=(((1,), (1,)), ((), ())),
        preferred_element_type=jnp.float32,
    )

    @pl.when(k == pl.num_programs(2) - 1)
    def _finalize():
        # Bias folded in exactly once, at finalize.
        o_ref[...] = (acc_ref[...] + b_ref[...]).astype(o_ref.dtype)


# -----------------------------------------------------------------------------
# Wrapper
# -----------------------------------------------------------------------------
def linear_forward(x, weight, bias=None, *, compute_dtype=jnp.bfloat16,
                   out_dtype=None, tb=None, tk=None, td=None):
    """Pallas TPU implementation of nn.Linear forward: y = x @ W^T + b.

    x:      (..., D)
    weight: (K, D)   torch nn.Linear layout, used as-is (no transpose copy)
    bias:   (K,) or None
    """
    *lead, D = x.shape
    K, D2 = weight.shape
    assert D == D2, (D, D2)

    out_dtype = out_dtype or x.dtype
    x2 = x.reshape(-1, D)
    B = x2.shape[0]

    # bf16 operands, f32 accumulation on the MXU.  No-op cast if inputs are
    # already in compute_dtype.
    xc = x2.astype(compute_dtype)
    wc = weight.astype(compute_dtype)
    b2 = (jnp.zeros((1, K), jnp.float32) if bias is None
          else bias.astype(jnp.float32).reshape(1, K))

    # ---- tile selection -----------------------------------------------------
    # Sublane dim (B): multiple of 8.  Lane dims (K / D tiles): multiples of
    # 256 to match the 2x256x256 MXU on v6e/v7x (128-wide wastes half of it).
    tb = tb or min(512, _round_up(B, 8))
    auto_tk = tk is None
    tk = tk or min(1024, _round_up(K, 256))

    single_d = (td is None and D <= 2048) or (td is not None and td >= D)
    td_eff = D if single_d else (td or min(1024, _round_up(D, 256)))

    nb = _cdiv(B, tb)
    # v7x megacore: ensure >=2 tiles along a parallel axis for small-batch
    # shapes so the second TensorCore is not idle (no-op on v5e/v6e).
    if auto_tk and nb == 1 and _cdiv(K, tk) == 1 and K > 256:
        tk = max(256, _round_up(_cdiv(K, 2), 256))
    nk = _cdiv(K, tk)

    # ---- grid / BlockSpecs ----------------------------------------------------
    if single_d:
        grid = (nb, nk)
        x_map = lambda i, j: (i, 0)
        w_map = lambda i, j: (j, 0)
        b_map = lambda i, j: (0, j)
        o_map = lambda i, j: (i, j)
        scratch = []
        kernel = _linear_kernel_single
        dims = ("parallel", "parallel")
        n_steps = nb * nk
    else:
        nd = _cdiv(D, td_eff)
        grid = (nb, nk, nd)
        x_map = lambda i, j, k: (i, k)
        w_map = lambda i, j, k: (j, k)
        b_map = lambda i, j, k: (0, j)
        o_map = lambda i, j, k: (i, j)
        scratch = [pltpu.VMEM((tb, tk), jnp.float32)]
        kernel = functools.partial(_linear_kernel_reduce, d_total=D, td=td_eff)
        dims = ("parallel", "parallel", "arbitrary")
        n_steps = nb * nk * nd

    # Small-batch regime is weight-DMA bound: deepen the W pipeline (only if
    # there are enough grid steps for the extra buffer to matter).
    if tb <= 64 and n_steps >= 3:
        w_spec = pl.BlockSpec((tk, td_eff), w_map, pipeline_mode=pl.Buffered(3))
    else:
        w_spec = pl.BlockSpec((tk, td_eff), w_map)

    out = pl.pallas_call(
        kernel,
        out_shape=jax.ShapeDtypeStruct((B, K), out_dtype),
        grid_spec=pltpu.PrefetchScalarGridSpec(
            num_scalar_prefetch=0,
            grid=grid,
            in_specs=[
                pl.BlockSpec((tb, td_eff), x_map),   # x tile
                w_spec,                              # W tile (torch layout)
                pl.BlockSpec((1, tk), b_map),        # bias tile
            ],
            out_specs=pl.BlockSpec((tb, tk), o_map),
            scratch_shapes=scratch,
        ),
        compiler_params=pltpu.CompilerParams(
            dimension_semantics=dims,
            # Default scoped VMEM is only 16 MiB on v5e / 32 MiB on v6e-v7x;
            # 48 MiB covers the largest tile config here while leaving
            # headroom under v7x's 64 MiB physical VMEM.
            vmem_limit_bytes=48 * 1024 * 1024,
        ),
    )(xc, wc, b2)

    return out.reshape(*lead, K)


if __name__ == "__main__":
    # Small shapes consistent with LinearLayer.forward: x is (batch, input_dim).
    batch = 8
    input_dimension = 32
    num_classes = 16

    key = jax.random.PRNGKey(0)
    kx, kw, kb = jax.random.split(key, 3)

    x = jax.random.normal(kx, (batch, input_dimension), dtype=jnp.float32)
    # torch nn.Linear-style init: weight (K, D), bias (K,)
    bound = 1.0 / (input_dimension ** 0.5)
    weight = jax.random.uniform(
        kw, (num_classes, input_dimension),
        minval=-bound, maxval=bound, dtype=jnp.float32)
    bias = jax.random.uniform(
        kb, (num_classes,), minval=-bound, maxval=bound, dtype=jnp.float32)

    ref = x @ weight.T + bias

    # Default fast path: bf16 operands, f32 MXU accumulation.
    out_bf16 = jax.block_until_ready(linear_forward(x, weight, bias))
    assert out_bf16.shape == (batch, num_classes)
    assert out_bf16.dtype == jnp.float32
    assert jnp.allclose(out_bf16, ref, atol=5e-2, rtol=5e-2), "bf16 path mismatch"

    # f32-operand path holds the tight tolerance.
    out_f32 = jax.block_until_ready(
        linear_forward(x, weight, bias, compute_dtype=jnp.float32))
    assert jnp.allclose(out_f32, ref, atol=1e-5, rtol=1e-5), "f32 path mismatch"

    print("KERNEL_OK")
</pallas_src>

<mosaic_0001>
module attributes {stable_mosaic.version = 11 : i64} {
  func.func @_linear_kernel_single(%arg0: i32, %arg1: i32, %arg2: memref<8x32xbf16, #tpu.memory_space<vmem>>, %arg3: memref<256x32xbf16, #tpu.memory_space<vmem>>, %arg4: memref<1x256xf32, #tpu.memory_space<vmem>>, %arg5: memref<8x256xf32, #tpu.memory_space<vmem>>) attributes {dimension_semantics = [#tpu.dimension_semantics<parallel>, #tpu.dimension_semantics<parallel>], iteration_bounds = array<i64: 1, 1>, scalar_prefetch = 0 : i64, scratch_operands = 0 : i64, tpu.core_type = #tpu.core_type<tc>, window_params = [{transform_indices = @transform_0, window_bounds = array<i64: 8, 32>}, {transform_indices = @transform_1, window_bounds = array<i64: 256, 32>}, {transform_indices = @transform_2, window_bounds = array<i64: 1, 256>}, {transform_indices = @transform_3, window_bounds = array<i64: 8, 256>}]} {
    %c0 = arith.constant 0 : index
    %c0_0 = arith.constant 0 : index
    %0 = vector.load %arg2[%c0, %c0_0] : memref<8x32xbf16, #tpu.memory_space<vmem>>, vector<8x32xbf16>
    %c0_1 = arith.constant 0 : index
    %c0_2 = arith.constant 0 : index
    %1 = vector.load %arg3[%c0_1, %c0_2] : memref<256x32xbf16, #tpu.memory_space<vmem>>, vector<256x32xbf16>
    %cst = arith.constant dense<0.000000e+00> : vector<8x256xf32>
    %2 = tpu.matmul %0, %1, %cst {dimension_numbers = #tpu.dot_dimension_numbers<[1], [1], [0], [0], [0, 0, 1, 0], [], []>} : vector<8x32xbf16>, vector<256x32xbf16>, vector<8x256xf32> -> vector<8x256xf32>
    %c0_3 = arith.constant 0 : index
    %c0_4 = arith.constant 0 : index
    %3 = vector.load %arg4[%c0_3, %c0_4] : memref<1x256xf32, #tpu.memory_space<vmem>>, vector<1x256xf32>
    %4 = vector.broadcast %3 : vector<1x256xf32> to vector<8x256xf32>
    %5 = arith.addf %2, %4 : vector<8x256xf32>
    %c0_5 = arith.constant 0 : index
    %c0_6 = arith.constant 0 : index
    %6 = vector.load %arg5[%c0_5, %c0_6] : memref<8x256xf32, #tpu.memory_space<vmem>>, vector<8x256xf32>
    tpu.vector_store %arg5[%c0_5, %c0_6], %5 {strides = array<i32>} : memref<8x256xf32, #tpu.memory_space<vmem>>, vector<8x256xf32>,
    return
  }
  func.func @transform_0(%arg0: i32, %arg1: i32) -> (i32, i32) {
    %c0_i32 = arith.constant 0 : i32
    %c0_i32_0 = arith.constant 0 : i32
    return %arg0, %c0_i32 : i32, i32
  }
  func.func @transform_1(%arg0: i32, %arg1: i32) -> (i32, i32) {
    %c0_i32 = arith.constant 0 : i32
    %c0_i32_0 = arith.constant 0 : i32
    return %arg1, %c0_i32 : i32, i32
  }
  func.func @transform_2(%arg0: i32, %arg1: i32) -> (i32, i32) {
    %c0_i32 = arith.constant 0 : i32
    %c0_i32_0 = arith.constant 0 : i32
    return %c0_i32, %arg1 : i32, i32
  }
  func.func @transform_3(%arg0: i32, %arg1: i32) -> (i32, i32) {
    %c0_i32 = arith.constant 0 : i32
    return %arg0, %arg1 : i32, i32
  }
}

</mosaic_0001>

<llo_original>
// kernel: tpu_custom_call.1
$region0: #{tpu_custom_call.1}
  #allocation0 [shape = 'u32[]', space=smem, size = 0x4, offset = 0x4, fixed_abs, tag = 'smem constant byte address 0x4 - core index']
  #allocation1 [shape = 'u32[144,128]{1,0:T(1,128)}', space=vmem, size = 0x12000, scoped, tag = 'internal scratch']
  %s0 = inlined_call_operand.hbm [shape: bf16[8,32], index: 0, kind: input, shape index: {}]
  %s1 = inlined_call_operand.hbm [shape: bf16[16,32], index: 1, kind: input, shape index: {}]
  %s2 = inlined_call_operand.vmem [shape: f32[1,16], index: 2, kind: input, shape index: {}]
  %s3 = inlined_call_operand.hbm [shape: f32[8,16], index: 3, kind: output, shape index: {}]
  %s4 = sld [smem:[#allocation0]]
  $region30: #{tpu_custom_call.1} parent=0
    _
  %s6 = ssub.s32 1, %s4
  %s7 = scalar_select 0, %s6, %s4
  $region1: #{tpu_custom_call.1} parent=0
    #allocation2 [shape = 'u8[2048]{0}', space=vmem, size = 0x800, scoped, tag = 'input window, operand 0, single buffered']
    #allocation3 [shape = 's32[1]{0}', space=sflag, size = 0x4, scoped, tag = 'scoped memory for tpu_custom_call.1']
    #allocation4 [shape = 's32[1]{0}', space=sflag, size = 0x4, scoped, tag = 'scoped memory for tpu_custom_call.1']
    #allocation5 [shape = 'u8[65536]{0}', space=vmem, size = 0x10000, scoped, tag = 'input window, operand 1, single buffered']
    #allocation6 [shape = 's32[1]{0}', space=sflag, size = 0x4, scoped, tag = 'scoped memory for tpu_custom_call.1']
    #allocation7 [shape = 'u8[8192]{0}', space=vmem, size = 0x2000, scoped, tag = 'output window, operand 0, single buffered']
    %8 = vsyncpa [#allocation3], 0
    %9 = vsyncpa [#allocation6], 0
    %10 = vsyncpa [#allocation4], 0
    // Predicated region
    $region2: #{tpu_custom_call.1} parent=1 // pred_check
      _
    $region3: #{tpu_custom_call.1} parent=1 // pred_check_branch
      %12 = sbr.rel (0) target = $region5
    $region4: #{tpu_custom_call.1} parent=1 // pred_region
      %s14 = ssub.s32 64, 64
      %15 = vsyncadd [#allocation3], %s14
      %s17 = sshll.u32 [#allocation2], 4
      %s18 = int_to_ptr.vmem [resolvable:$true] %s17
      %20 = dma.hbm_to_vmem [thread:$0]  %s0, 64, %s18, [#allocation3]
    $region5: #{tpu_custom_call.1} parent=1 // pred_fallthru
      _
    // Predicated region
    $region6: #{tpu_custom_call.1} parent=1 // pred_check
      _
    $region7: #{tpu_custom_call.1} parent=1 // pred_check_branch
      %22 = sbr.rel (0) target = $region9
    $region8: #{tpu_custom_call.1} parent=1 // pred_region
      %s24 = ssub.s32 2048, 128
      %25 = vsyncadd [#allocation6], %s24
      %s26 = sshll.u32 [#allocation5], 4
      %s27 = int_to_ptr.vmem [resolvable:$true] %s26
      %32 = dma.hbm_to_vmem [thread:$0]  %s1, 128, %s27, [#allocation6], 64, 64, 4
    $region9: #{tpu_custom_call.1} parent=1 // pred_fallthru
      _
    // Predicated region
    $region10: #{tpu_custom_call.1} parent=1 // pred_check
      _
    $region11: #{tpu_custom_call.1} parent=1 // pred_check_branch
      %34 = sbr.rel (0) target = $region13
    $region12: #{tpu_custom_call.1} parent=1 // pred_region
      _
    $region13: #{tpu_custom_call.1} parent=1 // pred_fallthru
      _
    // Predicated region
    $region14: #{tpu_custom_call.1} parent=1 // pred_check
      _
    $region15: #{tpu_custom_call.1} parent=1 // pred_check_branch
      %36 = sbr.rel (0) target = $region17
    $region16: #{tpu_custom_call.1} parent=1 // pred_region
      %37 = dma.done [#allocation3], 64
    $region17: #{tpu_custom_call.1} parent=1 // pred_fallthru
      _
    // Predicated region
    $region18: #{tpu_custom_call.1} parent=1 // pred_check
      _
    $region19: #{tpu_custom_call.1} parent=1 // pred_check_branch
      %39 = sbr.rel (0) target = $region21
    $region20: #{tpu_custom_call.1} parent=1 // pred_region
      %40 = dma.done [#allocation6], 2048
    $region21: #{tpu_custom_call.1} parent=1 // pred_fallthru
      _
    %v42 = vld [vmem:[#allocation2] sm:$0xf]
    %v43 = vld [vmem:[#allocation5] sm:$0xf]
    %v44 = vld [vmem:[#allocation5 + $0x4] sm:$0xf]
    %v45 = vld [vmem:[#allocation5 + $0x8] sm:$0xf]
    %v46 = vld [vmem:[#allocation5 + $0xc] sm:$0xf]
    %v47 = vld [vmem:[#allocation5 + $0x10] sm:$0xf]
    %v48 = vld [vmem:[#allocation5 + $0x14] sm:$0xf]
    %v49 = vld [vmem:[#allocation5 + $0x18] sm:$0xf]
    %v50 = vld [vmem:[#allocation5 + $0x1c] sm:$0xf]
    %v51 = vld [vmem:[#allocation5 + $0x20] sm:$0xf]
    %v52 = vld [vmem:[#allocation5 + $0x24] sm:$0xf]
    %v53 = vld [vmem:[#allocation5 + $0x28] sm:$0xf]
    %v54 = vld [vmem:[#allocation5 + $0x2c] sm:$0xf]
    %v55 = vld [vmem:[#allocation5 + $0x30] sm:$0xf]
    %v56 = vld [vmem:[#allocation5 + $0x34] sm:$0xf]
    %v57 = vld [vmem:[#allocation5 + $0x38] sm:$0xf]
    %v58 = vld [vmem:[#allocation5 + $0x3c] sm:$0xf]
    %v59 = vld [vmem:[#allocation5 + $0x40] sm:$0xf]
    %v60 = vld [vmem:[#allocation5 + $0x44] sm:$0xf]
    %v61 = vld [vmem:[#allocation5 + $0x48] sm:$0xf]
    %v62 = vld [vmem:[#allocation5 + $0x4c] sm:$0xf]
    %v63 = vld [vmem:[#allocation5 + $0x50] sm:$0xf]
    %v64 = vld [vmem:[#allocation5 + $0x54] sm:$0xf]
    %v65 = vld [vmem:[#allocation5 + $0x58] sm:$0xf]
    %v66 = vld [vmem:[#allocation5 + $0x5c] sm:$0xf]
    %v67 = vld [vmem:[#allocation5 + $0x60] sm:$0xf]
    %v68 = vld [vmem:[#allocation5 + $0x64] sm:$0xf]
    %v69 = vld [vmem:[#allocation5 + $0x68] sm:$0xf]
    %v70 = vld [vmem:[#allocation5 + $0x6c] sm:$0xf]
    %v71 = vld [vmem:[#allocation5 + $0x70] sm:$0xf]
    %v72 = vld [vmem:[#allocation5 + $0x74] sm:$0xf]
    %v73 = vld [vmem:[#allocation5 + $0x78] sm:$0xf]
    %v74 = vld [vmem:[#allocation5 + $0x7c] sm:$0xf]
    %v75 = vld [vmem:[%s2] sm:$0x3]
    %v77 = vlaneseq
    %v78 = vshrl.u32 %v77, 7
    %v79 = vsub.s32 0, %v78
    %v80 = vrot.slane %v75, %v79
    %v81 = vlaneseq
    %v82 = vshrl.u32 %v81, 7
    %v83 = vsub.s32 1, %v82
    %v84 = vrot.slane %v75, %v83
    %v119 = vunpack.c.l.b16 %v43
    %v120 = vunpack.c.l.b16 %v44
    %v121 = vunpack.c.l.b16 %v45
    %v122 = vunpack.c.l.b16 %v46
    %v123 = vunpack.c.l.b16 %v47
    %v124 = vunpack.c.l.b16 %v48
    %v125 = vunpack.c.l.b16 %v49
    %v126 = vunpack.c.l.b16 %v50
    %v127 = vunpack.c.l.b16 %v51
    %v128 = vunpack.c.l.b16 %v52
    %v129 = vunpack.c.l.b16 %v53
    %v130 = vunpack.c.l.b16 %v54
    %v131 = vunpack.c.l.b16 %v55
    %v132 = vunpack.c.l.b16 %v56
    %v133 = vunpack.c.l.b16 %v57
    %v134 = vunpack.c.l.b16 %v58
    %v135 = vunpack.c.l.b16 %v59
    %v136 = vunpack.c.l.b16 %v60
    %v137 = vunpack.c.l.b16 %v61
    %v138 = vunpack.c.l.b16 %v62
    %v139 = vunpack.c.l.b16 %v63
    %v140 = vunpack.c.l.b16 %v64
    %v141 = vunpack.c.l.b16 %v65
    %v142 = vunpack.c.l.b16 %v66
    %v143 = vunpack.c.l.b16 %v67
    %v144 = vunpack.c.l.b16 %v68
    %v145 = vunpack.c.l.b16 %v69
    %v146 = vunpack.c.l.b16 %v70
    %v147 = vunpack.c.l.b16 %v71
    %v148 = vunpack.c.l.b16 %v72
    %v149 = vunpack.c.l.b16 %v73
    %v150 = vunpack.c.l.b16 %v74
    %v151 = vpack.c.b16 %v120, %v119
    %v152 = vpack.c.b16 %v122, %v121
    %v153 = vpack.c.b16 %v124, %v123
    %v154 = vpack.c.b16 %v126, %v125
    %v155 = vpack.c.b16 %v128, %v127
    %v156 = vpack.c.b16 %v130, %v129
    %v157 = vpack.c.b16 %v132, %v131
    %v158 = vpack.c.b16 %v134, %v133
    %v159 = vpack.c.b16 %v136, %v135
    %v160 = vpack.c.b16 %v138, %v137
    %v161 = vpack.c.b16 %v140, %v139
    %v162 = vpack.c.b16 %v142, %v141
    %v163 = vpack.c.b16 %v144, %v143
    %v164 = vpack.c.b16 %v146, %v145
    %v165 = vpack.c.b16 %v148, %v147
    %v166 = vpack.c.b16 %v150, %v149
    %vm167 = vcmask 261120
    %v169 = vsel %vm167, %v42, 0
    %v172 = vsel %vm167, %v151, 0
    %v175 = vsel %vm167, %v152, 0
    %v178 = vsel %vm167, %v153, 0
    %v181 = vsel %vm167, %v154, 0
    %v184 = vsel %vm167, %v155, 0
    %v187 = vsel %vm167, %v156, 0
    %v190 = vsel %vm167, %v157, 0
    %v193 = vsel %vm167, %v158, 0
    %v196 = vsel %vm167, %v159, 0
    %v199 = vsel %vm167, %v160, 0
    %v202 = vsel %vm167, %v161, 0
    %v205 = vsel %vm167, %v162, 0
    %v208 = vsel %vm167, %v163, 0
    %v211 = vsel %vm167, %v164, 0
    %v214 = vsel %vm167, %v165, 0
    %v217 = vsel %vm167, %v166, 0
    %219 = vmatprep.subr.bf16.mxu0 0
    %220 = vmatpush1.bf16.xpose.msra.mxu0 %v172
    %221 = vmatprep.subr.bf16.mxu0 0
    %222 = vmatpush1.bf16.xpose.msra.mxu0 %v175
    %223 = vmatprep.subr.bf16.mxu0 0
    %224 = vmatpush1.bf16.xpose.msra.mxu0 %v178
    %225 = vmatprep.subr.bf16.mxu0 0
    %226 = vmatpush1.bf16.xpose.msra.mxu0 %v181
    %227 = vmatprep.subr.bf16.mxu0 0
    %228 = vmatpush1.bf16.xpose.msra.mxu0 %v184
    %229 = vmatprep.subr.bf16.mxu0 0
    %230 = vmatpush1.bf16.xpose.msra.mxu0 %v187
    %231 = vmatprep.subr.bf16.mxu0 0
    %232 = vmatpush1.bf16.xpose.msra.mxu0 %v190
    %233 = vmatprep.subr.bf16.mxu0 0
    %234 = vmatpush1.bf16.xpose.msra.mxu0 %v193
    %235 = vmatprep.subr.bf16.mxu0 0
    %236 = vmatpush1.bf16.xpose.msra.mxu0 %v196
    %237 = vmatprep.subr.bf16.mxu0 0
    %238 = vmatpush1.bf16.xpose.msra.mxu0 %v199
    %239 = vmatprep.subr.bf16.mxu0 0
    %240 = vmatpush1.bf16.xpose.msra.mxu0 %v202
    %241 = vmatprep.subr.bf16.mxu0 0
    %242 = vmatpush1.bf16.xpose.msra.mxu0 %v205
    %243 = vmatprep.subr.bf16.mxu0 0
    %244 = vmatpush1.bf16.xpose.msra.mxu0 %v208
    %245 = vmatprep.subr.bf16.mxu0 0
    %246 = vmatpush1.bf16.xpose.msra.mxu0 %v211
    %247 = vmatprep.subr.bf16.mxu0 0
    %248 = vmatpush1.bf16.xpose.msra.mxu0 %v214
    %249 = vmatprep.subr.bf16.mxu0 0
    %250 = vmatpush1.bf16.xpose.msra.mxu0 %v217
    %251 = vmatprep.mubr.bf16.mxu0 0
    %252 = vmatmul.mubr.bf16.gmra.mrb[0].mxu0 %v169
    %v253 = vpop.f32.mrb[0].mxu0
    %v254 = vadd.f32 %v80, %v253
    %v255 = vpop.f32.mrb[0].mxu0
    %v256 = vadd.f32 %v84, %v255
    %v257 = vpop.f32.mrb[0].mxu0
    %v258 = vpop.f32.mrb[0].mxu0
    %259 = vdwg.mxu0
    %260 = vst [vmem:[#allocation7] sm:$0xff] %v254
    %261 = vst [vmem:[#allocation7 + $0x8] sm:$0xff] %v256
    // Predicated region
    $region22: #{tpu_custom_call.1} parent=1 // pred_check
      _
    $region23: #{tpu_custom_call.1} parent=1 // pred_check_branch
      %263 = sbr.rel (0) target = $region25
    $region24: #{tpu_custom_call.1} parent=1 // pred_region
      %s265 = ssub.s32 256, 128
      %266 = vsyncadd [#allocation4], %s265
      %s268 = sshll.u32 [#allocation7], 4
      %s269 = int_to_ptr.vmem [resolvable:$true] %s268
      %271 = dma.vmem_to_hbm [thread:$0]  %s269, 128, %s3, [#allocation4]
    $region25: #{tpu_custom_call.1} parent=1 // pred_fallthru
      _
    // Predicated region
    $region26: #{tpu_custom_call.1} parent=1 // pred_check
      _
    $region27: #{tpu_custom_call.1} parent=1 // pred_check_branch
      %273 = sbr.rel (0) target = $region29
    $region28: #{tpu_custom_call.1} parent=1 // pred_region
      %274 = dma.done [#allocation4], 256
    $region29: #{tpu_custom_call.1} parent=1 // pred_fallthru
      _
    %275 = vsyncpa [#allocation3], 1
    %276 = vsyncpa [#allocation6], 1
    %277 = vsyncpa [#allocation4], 1

</llo_original>
